<compile_context>
chip_gen: v7x
topology: tpu7x:2x2x1
jax: 0.10.0
libtpu: 0.0.40
codegen_flags: <defaults>
</compile_context>

<pallas_src>
import functools
import math

import jax
import jax.numpy as jnp
from jax import lax
from jax.experimental import pallas as pl
from jax.experimental.pallas import tpu as pltpu


# --------------------------------------------------------------------------
# Kernel 1: small vocab -> one-hot MXU matmul against the VMEM-resident LUT.
# --------------------------------------------------------------------------
def _embed_matmul_kernel(ids_ref, lut_ref, out_ref, *, scale, vocab_padded):
    T = ids_ref.shape[0]
    ids = ids_ref[...]                                        # (T, 1) int32 (VMEM)
    cols = lax.broadcasted_iota(jnp.int32, (T, vocab_padded), 1)
    one_hot = (ids == cols).astype(lut_ref.dtype)             # (T, Vp)
    res = jnp.dot(one_hot, lut_ref[...], preferred_element_type=jnp.float32)
    out_ref[...] = (res * scale).astype(out_ref.dtype)        # one dense store


# --------------------------------------------------------------------------
# Kernel 2: VMEM-resident LUT, grouped row gather (dense sublane-tile stores).
# --------------------------------------------------------------------------
def _embed_gather_kernel(ids_ref, lut_ref, out_ref, *, scale, tokens_per_block,
                         group):
    n_groups = tokens_per_block // group

    def gbody(g, carry):
        base = pl.multiple_of(g * group, group)
        # Gather `group` rows (static inner unroll) into one (group, Dp) tile.
        rows = [lut_ref[pl.ds(ids_ref[0, base + r], 1), :] for r in range(group)]
        tile = jnp.concatenate(rows, axis=0)
        out_ref[pl.ds(base, group), :] = (tile * scale).astype(out_ref.dtype)
        return carry

    lax.fori_loop(0, n_groups, gbody, 0)


# --------------------------------------------------------------------------
# Kernel 3: LUT stays in HBM; rows DMA'd straight into the output tile.
# --------------------------------------------------------------------------
def _embed_hbm_kernel(ids_ref, lut_hbm, out_ref, sems, *, scale,
                      tokens_per_block, n_slots):
    def row_copy(i, tok, slot):
        return pltpu.make_async_copy(
            lut_hbm.at[pl.ds(tok, 1), :],
            out_ref.at[pl.ds(i, 1), :],
            sems.at[slot],
        )

    # Prime the pipeline: n_slots row DMAs in flight (n_slots <= T, static).
    for s in range(n_slots):
        row_copy(s, ids_ref[0, s], s).start()

    def body(i, carry):
        slot = i % n_slots
        # Scalar SMEM reads hoisted ABOVE the wait (wait breaks sst->sld fwd).
        tok_i = ids_ref[0, i]
        nxt = jnp.minimum(i + n_slots, tokens_per_block - 1)   # clamp: no SMEM OOB
        tok_next = ids_ref[0, nxt]
        # Wait with the identical descriptor that was started for row i.
        row_copy(i, tok_i, slot).wait()

        @pl.when(i + n_slots < tokens_per_block)
        def _():
            row_copy(i + n_slots, tok_next, slot).start()      # refill the slot

        return carry

    lax.fori_loop(0, tokens_per_block, body, 0)
    # All rows landed in out_ref; apply the scale once as a dense VPU pass.
    out_ref[...] = (out_ref[...] * scale).astype(out_ref.dtype)


# --------------------------------------------------------------------------
# Wrapper: padding, tiling, path selection, dispatch.
# --------------------------------------------------------------------------
def embeddings_forward(x, lut, *, tokens_per_block=256, force_path="auto"):
    """Pallas equivalent of `Embeddings.forward`.

    x:   (B, S) int32 token ids
    lut: (vocab, d_model) embedding table
    returns (B, S, d_model), dtype of `lut`
    """
    B, S = x.shape
    vocab, d_model = lut.shape
    scale = float(math.sqrt(d_model))          # scale uses the ORIGINAL d_model
    dtype = lut.dtype
    itemsize = jnp.dtype(dtype).itemsize

    # ---- padding: lane-dense last dim, sublane-packing-aligned vocab ------
    align = max(8, 32 // itemsize)             # 8 f32 / 16 bf16 / 32 int8
    Dp = ((d_model + 127) // 128) * 128
    Vp = ((vocab + align - 1) // align) * align
    if (Vp, Dp) != (vocab, d_model):
        lut = jnp.pad(lut, ((0, Vp - vocab), (0, Dp - d_model)))

    # ---- token tiling: T tokens per grid step, T a multiple of `align` ----
    n_tok = B * S
    T = max(align, min(int(tokens_per_block),
                       ((n_tok + align - 1) // align) * align))
    T = (T // align) * align
    n_tok_p = ((n_tok + T - 1) // T) * T
    ids = x.reshape(-1).astype(jnp.int32)
    if n_tok_p != n_tok:
        ids = jnp.pad(ids, (0, n_tok_p - n_tok))               # pad with token 0
    n_tiles = n_tok_p // T

    table_bytes = Vp * Dp * itemsize
    out_tile_bytes = T * Dp * itemsize

    # ---- VMEM budget (v7x has only 64 MiB/TC; v5e/v6e have 128 MiB) -------
    try:
        vmem_cap = int(pltpu.get_tpu_info().vmem_capacity_bytes)
    except Exception:
        vmem_cap = 64 << 20                                    # conservative (v7x)
    vmem_budget = int(vmem_cap * 0.75)
    # LUT is pinned to a single buffer (pl.Buffered(1)): count it once.
    vmem_needed = table_bytes + 2 * out_tile_bytes + (4 << 20)
    matmul_extra = T * Vp * max(itemsize, 4)                   # one-hot scratch
    can_resident = vmem_needed <= vmem_budget
    can_matmul = (Vp <= 2048) and (vmem_needed + matmul_extra <= vmem_budget)

    if force_path == "auto":
        path = "matmul" if can_matmul else ("gather" if can_resident else "hbm")
    else:
        path = force_path

    vmem_limit = int(min(vmem_cap,
                         max(vmem_needed + (matmul_extra if path == "matmul" else 0),
                             32 << 20)))

    # On megacore parts each core streams its own copy of a resident LUT; if
    # the whole output is smaller than one table load, one core is cheaper.
    out_bytes_total = n_tok_p * Dp * itemsize
    if path != "hbm" and out_bytes_total < table_bytes and n_tiles > 1:
        sem = ("arbitrary",)
    else:
        sem = ("parallel",)

    out_shape = jax.ShapeDtypeStruct((n_tok_p, Dp), dtype)
    lut_spec = pl.BlockSpec((Vp, Dp), lambda t: (0, 0),
                            pipeline_mode=pl.Buffered(buffer_count=1))
    out_spec = pl.BlockSpec((T, Dp), lambda t: (t, 0))
    cparams = pltpu.CompilerParams(dimension_semantics=sem,
                                   vmem_limit_bytes=vmem_limit)

    if path == "matmul":
        ids_col = ids.reshape(n_tok_p, 1)
        out_flat = pl.pallas_call(
            functools.partial(_embed_matmul_kernel, scale=scale, vocab_padded=Vp),
            out_shape=out_shape,
            grid=(n_tiles,),
            in_specs=[pl.BlockSpec((T, 1), lambda t: (t, 0)),   # ids tile (VMEM)
                      lut_spec],
            out_specs=out_spec,
            compiler_params=cparams,
        )(ids_col, lut)
    elif path == "gather":
        ids_2d = ids.reshape(n_tiles, T)
        out_flat = pl.pallas_call(
            functools.partial(_embed_gather_kernel, scale=scale,
                              tokens_per_block=T, group=align),
            out_shape=out_shape,
            grid=(n_tiles,),
            in_specs=[pl.BlockSpec((1, T), lambda t: (t, 0),
                                   memory_space=pltpu.MemorySpace.SMEM),
                      lut_spec],
            out_specs=out_spec,
            compiler_params=cparams,
        )(ids_2d, lut)
    else:  # "hbm" fallback: table stays in HBM, per-row DMA gather
        ids_2d = ids.reshape(n_tiles, T)
        n_slots = min(16, T)                                   # in-flight row DMAs
        out_flat = pl.pallas_call(
            functools.partial(_embed_hbm_kernel, scale=scale,
                              tokens_per_block=T, n_slots=n_slots),
            out_shape=out_shape,
            grid=(n_tiles,),
            in_specs=[pl.BlockSpec((1, T), lambda t: (t, 0),
                                   memory_space=pltpu.MemorySpace.SMEM),
                      pl.BlockSpec(memory_space=pl.ANY)],      # LUT stays in HBM
            out_specs=out_spec,
            scratch_shapes=[pltpu.SemaphoreType.DMA((n_slots,))],
            compiler_params=pltpu.CompilerParams(
                dimension_semantics=("parallel",),
                vmem_limit_bytes=vmem_limit),
        )(ids_2d, lut)

    out = out_flat
    if n_tok_p != n_tok:
        out = out[:n_tok]
    if Dp != d_model:
        out = out[:, :d_model]
    return out.reshape(B, S, d_model)


if __name__ == "__main__":
    key = jax.random.PRNGKey(0)
    k_lut, k_ids, k_lut2, k_ids2 = jax.random.split(key, 4)

    # ---- config 1: aligned shapes -----------------------------------------
    B, S = 4, 64
    vocab, d_model = 512, 128
    lut = jax.random.normal(k_lut, (vocab, d_model), dtype=jnp.float32)
    x = jax.random.randint(k_ids, (B, S), minval=0, maxval=vocab, dtype=jnp.int32)
    ref = (jnp.take(lut, x.reshape(-1), axis=0).reshape(B, S, d_model)
           * math.sqrt(d_model))

    for path in ("auto", "matmul", "gather", "hbm"):
        out = jax.block_until_ready(embeddings_forward(x, lut, force_path=path))
        assert out.shape == (B, S, d_model)
        assert out.dtype == jnp.float32
        assert jnp.allclose(out, ref, atol=1e-5, rtol=1e-5), f"{path} mismatch"

    # ---- config 2: unaligned shapes (exercises padding logic) -------------
    B2, S2 = 2, 5
    vocab2, d_model2 = 50, 96
    lut2 = jax.random.normal(k_lut2, (vocab2, d_model2), dtype=jnp.float32)
    x2 = jax.random.randint(k_ids2, (B2, S2), minval=0, maxval=vocab2,
                            dtype=jnp.int32)
    ref2 = (jnp.take(lut2, x2.reshape(-1), axis=0).reshape(B2, S2, d_model2)
            * math.sqrt(d_model2))

    for path in ("auto", "matmul", "gather", "hbm"):
        out2 = jax.block_until_ready(embeddings_forward(x2, lut2, force_path=path))
        assert out2.shape == (B2, S2, d_model2)
        assert jnp.allclose(out2, ref2, atol=1e-5, rtol=1e-5), f"{path}2 mismatch"

    print("KERNEL_OK")
</pallas_src>

<mosaic_0001>
module attributes {stable_mosaic.version = 11 : i64} {
  func.func @_embed_matmul_kernel(%arg0: i32, %arg1: memref<256x1xi32, #tpu.memory_space<vmem>>, %arg2: memref<512x128xf32, #tpu.memory_space<vmem>>, %arg3: memref<256x128xf32, #tpu.memory_space<vmem>>) attributes {dimension_semantics = [#tpu.dimension_semantics<parallel>], iteration_bounds = array<i64: 1>, scalar_prefetch = 0 : i64, scratch_operands = 0 : i64, tpu.core_type = #tpu.core_type<tc>, window_params = [{transform_indices = @transform_0, window_bounds = array<i64: 256, 1>}, {pipeline_mode = #tpu.pipeline_mode<synchronous>, transform_indices = @transform_1, window_bounds = array<i64: 512, 128>}, {transform_indices = @transform_2, window_bounds = array<i64: 256, 128>}]} {
    %c0 = arith.constant 0 : index
    %c0_0 = arith.constant 0 : index
    %0 = vector.load %arg1[%c0, %c0_0] : memref<256x1xi32, #tpu.memory_space<vmem>>, vector<256x1xi32>
    %1 = tpu.iota {dimensions = array<i32: 1>} : vector<256x512xi32>
    %2 = vector.broadcast %0 : vector<256x1xi32> to vector<256x512xi32>
    %3 = arith.cmpi eq, %2, %1 : vector<256x512xi32>
    %4 = arith.extui %3 : vector<256x512xi1> to vector<256x512xi32>
    %5 = arith.sitofp %4 : vector<256x512xi32> to vector<256x512xf32>
    %c0_1 = arith.constant 0 : index
    %c0_2 = arith.constant 0 : index
    %6 = vector.load %arg2[%c0_1, %c0_2] : memref<512x128xf32, #tpu.memory_space<vmem>>, vector<512x128xf32>
    %cst = arith.constant dense<0.000000e+00> : vector<256x128xf32>
    %7 = tpu.matmul %5, %6, %cst {dimension_numbers = #tpu.dot_dimension_numbers<[1], [0], [0], [1], [0, 0, 1, 1], [], []>} : vector<256x512xf32>, vector<512x128xf32>, vector<256x128xf32> -> vector<256x128xf32>
    %cst_3 = arith.constant 11.3137083 : f32
    %8 = vector.broadcast %cst_3 : f32 to vector<256x128xf32>
    %9 = arith.mulf %7, %8 : vector<256x128xf32>
    %c0_4 = arith.constant 0 : index
    %c0_5 = arith.constant 0 : index
    %10 = vector.load %arg3[%c0_4, %c0_5] : memref<256x128xf32, #tpu.memory_space<vmem>>, vector<256x128xf32>
    tpu.vector_store %arg3[%c0_4, %c0_5], %9 {strides = array<i32>} : memref<256x128xf32, #tpu.memory_space<vmem>>, vector<256x128xf32>,
    return
  }
  func.func @transform_0(%arg0: i32) -> (i32, i32) {
    %c0_i32 = arith.constant 0 : i32
    %c0_i32_0 = arith.constant 0 : i32
    return %arg0, %c0_i32 : i32, i32
  }
  func.func @transform_1(%arg0: i32) -> (i32, i32) {
    %c0_i32 = arith.constant 0 : i32
    %c0_i32_0 = arith.constant 0 : i32
    %c0_i32_1 = arith.constant 0 : i32
    return %c0_i32, %c0_i32_0 : i32, i32
  }
  func.func @transform_2(%arg0: i32) -> (i32, i32) {
    %c0_i32 = arith.constant 0 : i32
    %c0_i32_0 = arith.constant 0 : i32
    return %arg0, %c0_i32 : i32, i32
  }
}

</mosaic_0001>

<llo_original>
// kernel: tpu_custom_call.1
$region0: #{tpu_custom_call.1}
  #allocation0 [shape = 'u32[]', space=smem, size = 0x4, offset = 0x4, fixed_abs, tag = 'smem constant byte address 0x4 - core index']
  #allocation1 [shape = 'u32[144,128]{1,0:T(1,128)}', space=vmem, size = 0x12000, scoped, tag = 'internal scratch']
  %s0 = inlined_call_operand.vmem [shape: s32[256,1], index: 0, kind: input, shape index: {}]
  %s1 = inlined_call_operand.hbm [shape: f32[512,128], index: 1, kind: input, shape index: {}]
  %s2 = inlined_call_operand.hbm [shape: f32[256,128], index: 2, kind: output, shape index: {}]
  %s3 = sld [smem:[#allocation0]]
  $region22: #{tpu_custom_call.1} parent=0
    _
  %s5 = ssub.s32 1, %s3
  %s6 = scalar_select 0, %s5, %s3
  $region1: #{tpu_custom_call.1} parent=0
    #allocation2 [shape = 'u8[262144]{0}', space=vmem, size = 0x40000, scoped, tag = 'input window, operand 1, single buffered']
    #allocation3 [shape = 's32[1]{0}', space=sflag, size = 0x4, scoped, tag = 'scoped memory for tpu_custom_call.1']
    #allocation4 [shape = 's32[1]{0}', space=sflag, size = 0x4, scoped, tag = 'scoped memory for tpu_custom_call.1']
    #allocation5 [shape = 'u8[131072]{0}', space=vmem, size = 0x20000, scoped, tag = 'output window, operand 0, single buffered']
    %7 = vsyncpa [#allocation3], 0
    %8 = vsyncpa [#allocation4], 0
    // Predicated region
    $region2: #{tpu_custom_call.1} parent=1 // pred_check
      _
    $region3: #{tpu_custom_call.1} parent=1 // pred_check_branch
      %10 = sbr.rel (0) target = $region5
    $region4: #{tpu_custom_call.1} parent=1 // pred_region
      _
    $region5: #{tpu_custom_call.1} parent=1 // pred_fallthru
      _
    // Predicated region
    $region6: #{tpu_custom_call.1} parent=1 // pred_check
      _
    $region7: #{tpu_custom_call.1} parent=1 // pred_check_branch
      %12 = sbr.rel (0) target = $region9
    $region8: #{tpu_custom_call.1} parent=1 // pred_region
      %s14 = ssub.s32 8192, 8192
      %15 = vsyncadd [#allocation3], %s14
      %s16 = sshll.u32 [#allocation2], 4
      %s17 = int_to_ptr.vmem [resolvable:$true] %s16
      %22 = dma.hbm_to_vmem [thread:$0]  %s1, 8192, %s17, [#allocation3], 128, 128, 8
    $region9: #{tpu_custom_call.1} parent=1 // pred_fallthru
      _
    // Predicated region
    $region10: #{tpu_custom_call.1} parent=1 // pred_check
      _
    $region11: #{tpu_custom_call.1} parent=1 // pred_check_branch
      %24 = sbr.rel (0) target = $region13
    $region12: #{tpu_custom_call.1} parent=1 // pred_region
      %25 = dma.done [#allocation3], 8192
    $region13: #{tpu_custom_call.1} parent=1 // pred_fallthru
      _
    %v26 = vld [vmem:[%s0] sm:$0xff]
    %v27 = vld [vmem:[%s0 + $0x8] sm:$0xff]
    %v28 = vld [vmem:[%s0 + $0x10] sm:$0xff]
    %v29 = vld [vmem:[%s0 + $0x18] sm:$0xff]
    %v30 = vld [vmem:[%s0 + $0x20] sm:$0xff]
    %v31 = vld [vmem:[%s0 + $0x28] sm:$0xff]
    %v32 = vld [vmem:[%s0 + $0x30] sm:$0xff]
    %v33 = vld [vmem:[%s0 + $0x38] sm:$0xff]
    %v34 = vld [vmem:[%s0 + $0x40] sm:$0xff]
    %v35 = vld [vmem:[%s0 + $0x48] sm:$0xff]
    %v36 = vld [vmem:[%s0 + $0x50] sm:$0xff]
    %v37 = vld [vmem:[%s0 + $0x58] sm:$0xff]
    %v38 = vld [vmem:[%s0 + $0x60] sm:$0xff]
    %v39 = vld [vmem:[%s0 + $0x68] sm:$0xff]
    %v40 = vld [vmem:[%s0 + $0x70] sm:$0xff]
    %v41 = vld [vmem:[%s0 + $0x78] sm:$0xff]
    %v42 = vld [vmem:[%s0 + $0x80] sm:$0xff]
    %v43 = vld [vmem:[%s0 + $0x88] sm:$0xff]
    %v44 = vld [vmem:[%s0 + $0x90] sm:$0xff]
    %v45 = vld [vmem:[%s0 + $0x98] sm:$0xff]
    %v46 = vld [vmem:[%s0 + $0xa0] sm:$0xff]
    %v47 = vld [vmem:[%s0 + $0xa8] sm:$0xff]
    %v48 = vld [vmem:[%s0 + $0xb0] sm:$0xff]
    %v49 = vld [vmem:[%s0 + $0xb8] sm:$0xff]
    %v50 = vld [vmem:[%s0 + $0xc0] sm:$0xff]
    %v51 = vld [vmem:[%s0 + $0xc8] sm:$0xff]
    %v52 = vld [vmem:[%s0 + $0xd0] sm:$0xff]
    %v53 = vld [vmem:[%s0 + $0xd8] sm:$0xff]
    %v54 = vld [vmem:[%s0 + $0xe0] sm:$0xff]
    %v55 = vld [vmem:[%s0 + $0xe8] sm:$0xff]
    %v56 = vld [vmem:[%s0 + $0xf0] sm:$0xff]
    %v57 = vld [vmem:[%s0 + $0xf8] sm:$0xff]
    %v58 = vlaneseq
    %v59 = vand.u32 %v58, 127
    %v60 = vadd.s32 %v59, 128
    %v61 = vadd.s32 %v59, 256
    %v62 = vadd.s32 %v59, 384
    %63 = vset.pattern.permute.xlu0 0
    %64 = vperm.xlu0 %63, %v26
    %v65 = vpop.permute.xlu0 %64
    %66 = vset.pattern.permute.xlu0 0
    %67 = vperm.xlu0 %66, %v27
    %v68 = vpop.permute.xlu0 %67
    %69 = vset.pattern.permute.xlu0 0
    %70 = vperm.xlu0 %69, %v28
    %v71 = vpop.permute.xlu0 %70
    %72 = vset.pattern.permute.xlu0 0
    %73 = vperm.xlu0 %72, %v29
    %v74 = vpop.permute.xlu0 %73
    %75 = vset.pattern.permute.xlu0 0
    %76 = vperm.xlu0 %75, %v30
    %v77 = vpop.permute.xlu0 %76
    %78 = vset.pattern.permute.xlu0 0
    %79 = vperm.xlu0 %78, %v31
    %v80 = vpop.permute.xlu0 %79
    %81 = vset.pattern.permute.xlu0 0
    %82 = vperm.xlu0 %81, %v32
    %v83 = vpop.permute.xlu0 %82
    %84 = vset.pattern.permute.xlu0 0
    %85 = vperm.xlu0 %84, %v33
    %v86 = vpop.permute.xlu0 %85
    %87 = vset.pattern.permute.xlu0 0
    %88 = vperm.xlu0 %87, %v34
    %v89 = vpop.permute.xlu0 %88
    %90 = vset.pattern.permute.xlu0 0
    %91 = vperm.xlu0 %90, %v35
    %v92 = vpop.permute.xlu0 %91
    %93 = vset.pattern.permute.xlu0 0
    %94 = vperm.xlu0 %93, %v36
    %v95 = vpop.permute.xlu0 %94
    %96 = vset.pattern.permute.xlu0 0
    %97 = vperm.xlu0 %96, %v37
    %v98 = vpop.permute.xlu0 %97
    %99 = vset.pattern.permute.xlu0 0
    %100 = vperm.xlu0 %99, %v38
    %v101 = vpop.permute.xlu0 %100
    %102 = vset.pattern.permute.xlu0 0
    %103 = vperm.xlu0 %102, %v39
    %v104 = vpop.permute.xlu0 %103
    %105 = vset.pattern.permute.xlu0 0
    %106 = vperm.xlu0 %105, %v40
    %v107 = vpop.permute.xlu0 %106
    %108 = vset.pattern.permute.xlu0 0
    %109 = vperm.xlu0 %108, %v41
    %v110 = vpop.permute.xlu0 %109
    %111 = vset.pattern.permute.xlu0 0
    %112 = vperm.xlu0 %111, %v42
    %v113 = vpop.permute.xlu0 %112
    %114 = vset.pattern.permute.xlu0 0
    %115 = vperm.xlu0 %114, %v43
    %v116 = vpop.permute.xlu0 %115
    %117 = vset.pattern.permute.xlu0 0
    %118 = vperm.xlu0 %117, %v44
    %v119 = vpop.permute.xlu0 %118
    %120 = vset.pattern.permute.xlu0 0
    %121 = vperm.xlu0 %120, %v45
    %v122 = vpop.permute.xlu0 %121
    %123 = vset.pattern.permute.xlu0 0
    %124 = vperm.xlu0 %123, %v46
    %v125 = vpop.permute.xlu0 %124
    %126 = vset.pattern.permute.xlu0 0
    %127 = vperm.xlu0 %126, %v47
    %v128 = vpop.permute.xlu0 %127
    %129 = vset.pattern.permute.xlu0 0
    %130 = vperm.xlu0 %129, %v48
    %v131 = vpop.permute.xlu0 %130
    %132 = vset.pattern.permute.xlu0 0
    %133 = vperm.xlu0 %132, %v49
    %v134 = vpop.permute.xlu0 %133
    %135 = vset.pattern.permute.xlu0 0
    %136 = vperm.xlu0 %135, %v50
    %v137 = vpop.permute.xlu0 %136
    %138 = vset.pattern.permute.xlu0 0
    %139 = vperm.xlu0 %138, %v51
    %v140 = vpop.permute.xlu0 %139
    %141 = vset.pattern.permute.xlu0 0
    %142 = vperm.xlu0 %141, %v52
    %v143 = vpop.permute.xlu0 %142
    %144 = vset.pattern.permute.xlu0 0
    %145 = vperm.xlu0 %144, %v53
    %v146 = vpop.permute.xlu0 %145
    %147 = vset.pattern.permute.xlu0 0
    %148 = vperm.xlu0 %147, %v54
    %v149 = vpop.permute.xlu0 %148
    %150 = vset.pattern.permute.xlu0 0
    %151 = vperm.xlu0 %150, %v55
    %v152 = vpop.permute.xlu0 %151
    %153 = vset.pattern.permute.xlu0 0
    %154 = vperm.xlu0 %153, %v56
    %v155 = vpop.permute.xlu0 %154
    %156 = vset.pattern.permute.xlu0 0
    %157 = vperm.xlu0 %156, %v57
    %v158 = vpop.permute.xlu0 %157
    %vm159 = vcmp.eq.s32.totalorder %v65, %v59
    %vm160 = vcmp.eq.s32.totalorder %v65, %v60
    %vm161 = vcmp.eq.s32.totalorder %v65, %v61
    %vm162 = vcmp.eq.s32.totalorder %v65, %v62
    %vm163 = vcmp.eq.s32.totalorder %v68, %v59
    %vm164 = vcmp.eq.s32.totalorder %v68, %v60
    %vm165 = vcmp.eq.s32.totalorder %v68, %v61
    %vm166 = vcmp.eq.s32.totalorder %v68, %v62
    %vm167 = vcmp.eq.s32.totalorder %v71, %v59
    %vm168 = vcmp.eq.s32.totalorder %v71, %v60
    %vm169 = vcmp.eq.s32.totalorder %v71, %v61
    %vm170 = vcmp.eq.s32.totalorder %v71, %v62
    %vm171 = vcmp.eq.s32.totalorder %v74, %v59
    %vm172 = vcmp.eq.s32.totalorder %v74, %v60
    %vm173 = vcmp.eq.s32.totalorder %v74, %v61
    %vm174 = vcmp.eq.s32.totalorder %v74, %v62
    %vm175 = vcmp.eq.s32.totalorder %v77, %v59
    %vm176 = vcmp.eq.s32.totalorder %v77, %v60
    %vm177 = vcmp.eq.s32.totalorder %v77, %v61
    %vm178 = vcmp.eq.s32.totalorder %v77, %v62
    %vm179 = vcmp.eq.s32.totalorder %v80, %v59
    %vm180 = vcmp.eq.s32.totalorder %v80, %v60
    %vm181 = vcmp.eq.s32.totalorder %v80, %v61
    %vm182 = vcmp.eq.s32.totalorder %v80, %v62
    %vm183 = vcmp.eq.s32.totalorder %v83, %v59
    %vm184 = vcmp.eq.s32.totalorder %v83, %v60
    %vm185 = vcmp.eq.s32.totalorder %v83, %v61
    %vm186 = vcmp.eq.s32.totalorder %v83, %v62
    %vm187 = vcmp.eq.s32.totalorder %v86, %v59
    %vm188 = vcmp.eq.s32.totalorder %v86, %v60
    %vm189 = vcmp.eq.s32.totalorder %v86, %v61
    %vm190 = vcmp.eq.s32.totalorder %v86, %v62
    %vm191 = vcmp.eq.s32.totalorder %v89, %v59
    %vm192 = vcmp.eq.s32.totalorder %v89, %v60
    %vm193 = vcmp.eq.s32.totalorder %v89, %v61
    %vm194 = vcmp.eq.s32.totalorder %v89, %v62
    %vm195 = vcmp.eq.s32.totalorder %v92, %v59
    %vm196 = vcmp.eq.s32.totalorder %v92, %v60
    %vm197 = vcmp.eq.s32.totalorder %v92, %v61
    %vm198 = vcmp.eq.s32.totalorder %v92, %v62
    %vm199 = vcmp.eq.s32.totalorder %v95, %v59
    %vm200 = vcmp.eq.s32.totalorder %v95, %v60
    %vm201 = vcmp.eq.s32.totalorder %v95, %v61
    %vm202 = vcmp.eq.s32.totalorder %v95, %v62
    %vm203 = vcmp.eq.s32.totalorder %v98, %v59
    %vm204 = vcmp.eq.s32.totalorder %v98, %v60
    %vm205 = vcmp.eq.s32.totalorder %v98, %v61
    %vm206 = vcmp.eq.s32.totalorder %v98, %v62
    %vm207 = vcmp.eq.s32.totalorder %v101, %v59
    %vm208 = vcmp.eq.s32.totalorder %v101, %v60
    %vm209 = vcmp.eq.s32.totalorder %v101, %v61
    %vm210 = vcmp.eq.s32.totalorder %v101, %v62
    %vm211 = vcmp.eq.s32.totalorder %v104, %v59
    %vm212 = vcmp.eq.s32.totalorder %v104, %v60
    %vm213 = vcmp.eq.s32.totalorder %v104, %v61
    %vm214 = vcmp.eq.s32.totalorder %v104, %v62
    %vm215 = vcmp.eq.s32.totalorder %v107, %v59
    %vm216 = vcmp.eq.s32.totalorder %v107, %v60
    %vm217 = vcmp.eq.s32.totalorder %v107, %v61
    %vm218 = vcmp.eq.s32.totalorder %v107, %v62
    %vm219 = vcmp.eq.s32.totalorder %v110, %v59
    %vm220 = vcmp.eq.s32.totalorder %v110, %v60
    %vm221 = vcmp.eq.s32.totalorder %v110, %v61
    %vm222 = vcmp.eq.s32.totalorder %v110, %v62
    %vm223 = vcmp.eq.s32.totalorder %v113, %v59
    %vm224 = vcmp.eq.s32.totalorder %v113, %v60
    %vm225 = vcmp.eq.s32.totalorder %v113, %v61
    %vm226 = vcmp.eq.s32.totalorder %v113, %v62
    %vm227 = vcmp.eq.s32.totalorder %v116, %v59
    %vm228 = vcmp.eq.s32.totalorder %v116, %v60
    %vm229 = vcmp.eq.s32.totalorder %v116, %v61
    %vm230 = vcmp.eq.s32.totalorder %v116, %v62
    %vm231 = vcmp.eq.s32.totalorder %v119, %v59
    %vm232 = vcmp.eq.s32.totalorder %v119, %v60
    %vm233 = vcmp.eq.s32.totalorder %v119, %v61
    %vm234 = vcmp.eq.s32.totalorder %v119, %v62
    %vm235 = vcmp.eq.s32.totalorder %v122, %v59
    %vm236 = vcmp.eq.s32.totalorder %v122, %v60
    %vm237 = vcmp.eq.s32.totalorder %v122, %v61
    %vm238 = vcmp.eq.s32.totalorder %v122, %v62
    %vm239 = vcmp.eq.s32.totalorder %v125, %v59
    %vm240 = vcmp.eq.s32.totalorder %v125, %v60
    %vm241 = vcmp.eq.s32.totalorder %v125, %v61
    %vm242 = vcmp.eq.s32.totalorder %v125, %v62
    %vm243 = vcmp.eq.s32.totalorder %v128, %v59
    %vm244 = vcmp.eq.s32.totalorder %v128, %v60
    %vm245 = vcmp.eq.s32.totalorder %v128, %v61
    %vm246 = vcmp.eq.s32.totalorder %v128, %v62
    %vm247 = vcmp.eq.s32.totalorder %v131, %v59
    %vm248 = vcmp.eq.s32.totalorder %v131, %v60
    %vm249 = vcmp.eq.s32.totalorder %v131, %v61
    %vm250 = vcmp.eq.s32.totalorder %v131, %v62
    %vm251 = vcmp.eq.s32.totalorder %v134, %v59
    %vm252 = vcmp.eq.s32.totalorder %v134, %v60
    %vm253 = vcmp.eq.s32.totalorder %v134, %v61
    %vm254 = vcmp.eq.s32.totalorder %v134, %v62
    %vm255 = vcmp.eq.s32.totalorder %v137, %v59
    %vm256 = vcmp.eq.s32.totalorder %v137, %v60
    %vm257 = vcmp.eq.s32.totalorder %v137, %v61
    %vm258 = vcmp.eq.s32.totalorder %v137, %v62
    %vm259 = vcmp.eq.s32.totalorder %v140, %v59
    %vm260 = vcmp.eq.s32.totalorder %v140, %v60
    %vm261 = vcmp.eq.s32.totalorder %v140, %v61
    %vm262 = vcmp.eq.s32.totalorder %v140, %v62
    %vm263 = vcmp.eq.s32.totalorder %v143, %v59
    %vm264 = vcmp.eq.s32.totalorder %v143, %v60
    %vm265 = vcmp.eq.s32.totalorder %v143, %v61
    %vm266 = vcmp.eq.s32.totalorder %v143, %v62
    %vm267 = vcmp.eq.s32.totalorder %v146, %v59
    %vm268 = vcmp.eq.s32.totalorder %v146, %v60
    %vm269 = vcmp.eq.s32.totalorder %v146, %v61
    %vm270 = vcmp.eq.s32.totalorder %v146, %v62
    %vm271 = vcmp.eq.s32.totalorder %v149, %v59
    %vm272 = vcmp.eq.s32.totalorder %v149, %v60
    %vm273 = vcmp.eq.s32.totalorder %v149, %v61
    %vm274 = vcmp.eq.s32.totalorder %v149, %v62
    %vm275 = vcmp.eq.s32.totalorder %v152, %v59
    %vm276 = vcmp.eq.s32.totalorder %v152, %v60
    %vm277 = vcmp.eq.s32.totalorder %v152, %v61
    %vm278 = vcmp.eq.s32.totalorder %v152, %v62
    %vm279 = vcmp.eq.s32.totalorder %v155, %v59
    %vm280 = vcmp.eq.s32.totalorder %v155, %v60
    %vm281 = vcmp.eq.s32.totalorder %v155, %v61
    %vm282 = vcmp.eq.s32.totalorder %v155, %v62
    %vm283 = vcmp.eq.s32.totalorder %v158, %v59
    %vm284 = vcmp.eq.s32.totalorder %v158, %v60
    %vm285 = vcmp.eq.s32.totalorder %v158, %v61
    %vm286 = vcmp.eq.s32.totalorder %v158, %v62
    %v287 = vsel %vm159, 1, 0
    %v288 = vsel %vm160, 1, 0
    %v289 = vsel %vm161, 1, 0
    %v290 = vsel %vm162, 1, 0
    %v291 = vsel %vm163, 1, 0
    %v292 = vsel %vm164, 1, 0
    %v293 = vsel %vm165, 1, 0
    %v294 = vsel %vm166, 1, 0
    %v295 = vsel %vm167, 1, 0
    %v296 = vsel %vm168, 1, 0
    %v297 = vsel %vm169, 1, 0
    %v298 = vsel %vm170, 1, 0
    %v299 = vsel %vm171, 1, 0
    %v300 = vsel %vm172, 1, 0
    %v301 = vsel %vm173, 1, 0
    %v302 = vsel %vm174, 1, 0
    %v303 = vsel %vm175, 1, 0
    %v304 = vsel %vm176, 1, 0
    %v305 = vsel %vm177, 1, 0
    %v306 = vsel %vm178, 1, 0
    %v307 = vsel %vm179, 1, 0
    %v308 = vsel %vm180, 1, 0
    %v309 = vsel %vm181, 1, 0
    %v310 = vsel %vm182, 1, 0
    %v311 = vsel %vm183, 1, 0
    %v312 = vsel %vm184, 1, 0
    %v313 = vsel %vm185, 1, 0
    %v314 = vsel %vm186, 1, 0
    %v315 = vsel %vm187, 1, 0
    %v316 = vsel %vm188, 1, 0
    %v317 = vsel %vm189, 1, 0
    %v318 = vsel %vm190, 1, 0
    %v319 = vsel %vm191, 1, 0
    %v320 = vsel %vm192, 1, 0
    %v321 = vsel %vm193, 1, 0
    %v322 = vsel %vm194, 1, 0
    %v323 = vsel %vm195, 1, 0
    %v324 = vsel %vm196, 1, 0
    %v325 = vsel %vm197, 1, 0
    %v326 = vsel %vm198, 1, 0
    %v327 = vsel %vm199, 1, 0
    %v328 = vsel %vm200, 1, 0
    %v329 = vsel %vm201, 1, 0
    %v330 = vsel %vm202, 1, 0
    %v331 = vsel %vm203, 1, 0
    %v332 = vsel %vm204, 1, 0
    %v333 = vsel %vm205, 1, 0
    %v334 = vsel %vm206, 1, 0
    %v335 = vsel %vm207, 1, 0
    %v336 = vsel %vm208, 1, 0
    %v337 = vsel %vm209, 1, 0
    %v338 = vsel %vm210, 1, 0
    %v339 = vsel %vm211, 1, 0
    %v340 = vsel %vm212, 1, 0
    %v341 = vsel %vm213, 1, 0
    %v342 = vsel %vm214, 1, 0
    %v343 = vsel %vm215, 1, 0
    %v344 = vsel %vm216, 1, 0
    %v345 = vsel %vm217, 1, 0
    %v346 = vsel %vm218, 1, 0
    %v347 = vsel %vm219, 1, 0
    %v348 = vsel %vm220, 1, 0
    %v349 = vsel %vm221, 1, 0
    %v350 = vsel %vm222, 1, 0
    %v351 = vsel %vm223, 1, 0
    %v352 = vsel %vm224, 1, 0
    %v353 = vsel %vm225, 1, 0
    %v354 = vsel %vm226, 1, 0
    %v355 = vsel %vm227, 1, 0
    %v356 = vsel %vm228, 1, 0
    %v357 = vsel %vm229, 1, 0
    %v358 = vsel %vm230, 1, 0
    %v359 = vsel %vm231, 1, 0
    %v360 = vsel %vm232, 1, 0
    %v361 = vsel %vm233, 1, 0
    %v362 = vsel %vm234, 1, 0
    %v363 = vsel %vm235, 1, 0
    %v364 = vsel %vm236, 1, 0
    %v365 = vsel %vm237, 1, 0
    %v366 = vsel %vm238, 1, 0
    %v367 = vsel %vm239, 1, 0
    %v368 = vsel %vm240, 1, 0
    %v369 = vsel %vm241, 1, 0
    %v370 = vsel %vm242, 1, 0
    %v371 = vsel %vm243, 1, 0
    %v372 = vsel %vm244, 1, 0
    %v373 = vsel %vm245, 1, 0
    %v374 = vsel %vm246, 1, 0
    %v375 = vsel %vm247, 1, 0
    %v376 = vsel %vm248, 1, 0
    %v377 = vsel %vm249, 1, 0
    %v378 = vsel %vm250, 1, 0
    %v379 = vsel %vm251, 1, 0
    %v380 = vsel %vm252, 1, 0
    %v381 = vsel %vm253, 1, 0
    %v382 = vsel %vm254, 1, 0
    %v383 = vsel %vm255, 1, 0
    %v384 = vsel %vm256, 1, 0
    %v385 = vsel %vm257, 1, 0
    %v386 = vsel %vm258, 1, 0
    %v387 = vsel %vm259, 1, 0
    %v388 = vsel %vm260, 1, 0
    %v389 = vsel %vm261, 1, 0
    %v390 = vsel %vm262, 1, 0
    %v391 = vsel %vm263, 1, 0
    %v392 = vsel %vm264, 1, 0
    %v393 = vsel %vm265, 1, 0
    %v394 = vsel %vm266, 1, 0
    %v395 = vsel %vm267, 1, 0
    %v396 = vsel %vm268, 1, 0
    %v397 = vsel %vm269, 1, 0
    %v398 = vsel %vm270, 1, 0
    %v399 = vsel %vm271, 1, 0
    %v400 = vsel %vm272, 1, 0
    %v401 = vsel %vm273, 1, 0
    %v402 = vsel %vm274, 1, 0
    %v403 = vsel %vm275, 1, 0
    %v404 = vsel %vm276, 1, 0
    %v405 = vsel %vm277, 1, 0
    %v406 = vsel %vm278, 1, 0
    %v407 = vsel %vm279, 1, 0
    %v408 = vsel %vm280, 1, 0
    %v409 = vsel %vm281, 1, 0
    %v410 = vsel %vm282, 1, 0
    %v411 = vsel %vm283, 1, 0
    %v412 = vsel %vm284, 1, 0
    %v413 = vsel %vm285, 1, 0
    %v414 = vsel %vm286, 1, 0
    %v415 = vcvt.s32.f32 %v287
    %v416 = vcvt.s32.f32 %v288
    %v417 = vcvt.s32.f32 %v289
    %v418 = vcvt.s32.f32 %v290
    %v419 = vcvt.s32.f32 %v291
    %v420 = vcvt.s32.f32 %v292
    %v421 = vcvt.s32.f32 %v293
    %v422 = vcvt.s32.f32 %v294
    %v423 = vcvt.s32.f32 %v295
    %v424 = vcvt.s32.f32 %v296
    %v425 = vcvt.s32.f32 %v297
    %v426 = vcvt.s32.f32 %v298
    %v427 = vcvt.s32.f32 %v299
    %v428 = vcvt.s32.f32 %v300
    %v429 = vcvt.s32.f32 %v301
    %v430 = vcvt.s32.f32 %v302
    %v431 = vcvt.s32.f32 %v303
    %v432 = vcvt.s32.f32 %v304
    %v433 = vcvt.s32.f32 %v305
    %v434 = vcvt.s32.f32 %v306
    %v435 = vcvt.s32.f32 %v307
    %v436 = vcvt.s32.f32 %v308
    %v437 = vcvt.s32.f32 %v309
    %v438 = vcvt.s32.f32 %v310
    %v439 = vcvt.s32.f32 %v311
    %v440 = vcvt.s32.f32 %v312
    %v441 = vcvt.s32.f32 %v313
    %v442 = vcvt.s32.f32 %v314
    %v443 = vcvt.s32.f32 %v315
    %v444 = vcvt.s32.f32 %v316
    %v445 = vcvt.s32.f32 %v317
    %v446 = vcvt.s32.f32 %v318
    %v447 = vcvt.s32.f32 %v319
    %v448 = vcvt.s32.f32 %v320
    %v449 = vcvt.s32.f32 %v321
    %v450 = vcvt.s32.f32 %v322
    %v451 = vcvt.s32.f32 %v323
    %v452 = vcvt.s32.f32 %v324
    %v453 = vcvt.s32.f32 %v325
    %v454 = vcvt.s32.f32 %v326
    %v455 = vcvt.s32.f32 %v327
    %v456 = vcvt.s32.f32 %v328
    %v457 = vcvt.s32.f32 %v329
    %v458 = vcvt.s32.f32 %v330
    %v459 = vcvt.s32.f32 %v331
    %v460 = vcvt.s32.f32 %v332
    %v461 = vcvt.s32.f32 %v333
    %v462 = vcvt.s32.f32 %v334
    %v463 = vcvt.s32.f32 %v335
    %v464 = vcvt.s32.f32 %v336
    %v465 = vcvt.s32.f32 %v337
    %v466 = vcvt.s32.f32 %v338
    %v467 = vcvt.s32.f32 %v339
    %v468 = vcvt.s32.f32 %v340
    %v469 = vcvt.s32.f32 %v341
    %v470 = vcvt.s32.f32 %v342
    %v471 = vcvt.s32.f32 %v343
    %v472 = vcvt.s32.f32 %v344
    %v473 = vcvt.s32.f32 %v345
    %v474 = vcvt.s32.f32 %v346
    %v475 = vcvt.s32.f32 %v347
    %v476 = vcvt.s32.f32 %v348
    %v477 = vcvt.s32.f32 %v349
    %v478 = vcvt.s32.f32 %v350
    %v479 = vcvt.s32.f32 %v351
    %v480 = vcvt.s32.f32 %v352
    %v481 = vcvt.s32.f32 %v353
    %v482 = vcvt.s32.f32 %v354
    %v483 = vcvt.s32.f32 %v355
    %v484 = vcvt.s32.f32 %v356
    %v485 = vcvt.s32.f32 %v357
    %v486 = vcvt.s32.f32 %v358
    %v487 = vcvt.s32.f32 %v359
    %v488 = vcvt.s32.f32 %v360
    %v489 = vcvt.s32.f32 %v361
    %v490 = vcvt.s32.f32 %v362
    %v491 = vcvt.s32.f32 %v363
    %v492 = vcvt.s32.f32 %v364
    %v493 = vcvt.s32.f32 %v365
    %v494 = vcvt.s32.f32 %v366
    %v495 = vcvt.s32.f32 %v367
    %v496 = vcvt.s32.f32 %v368
    %v497 = vcvt.s32.f32 %v369
    %v498 = vcvt.s32.f32 %v370
    %v499 = vcvt.s32.f32 %v371
    %v500 = vcvt.s32.f32 %v372
    %v501 = vcvt.s32.f32 %v373
    %v502 = vcvt.s32.f32 %v374
    %v503 = vcvt.s32.f32 %v375
    %v504 = vcvt.s32.f32 %v376
    %v505 = vcvt.s32.f32 %v377
    %v506 = vcvt.s32.f32 %v378
    %v507 = vcvt.s32.f32 %v379
    %v508 = vcvt.s32.f32 %v380
    %v509 = vcvt.s32.f32 %v381
    %v510 = vcvt.s32.f32 %v382
    %v511 = vcvt.s32.f32 %v383
    %v512 = vcvt.s32.f32 %v384
    %v513 = vcvt.s32.f32 %v385
    %v514 = vcvt.s32.f32 %v386
    %v515 = vcvt.s32.f32 %v387
    %v516 = vcvt.s32.f32 %v388
    %v517 = vcvt.s32.f32 %v389
    %v518 = vcvt.s32.f32 %v390
    %v519 = vcvt.s32.f32 %v391
    %v520 = vcvt.s32.f32 %v392
    %v521 = vcvt.s32.f32 %v393
    %v522 = vcvt.s32.f32 %v394
    %v523 = vcvt.s32.f32 %v395
    %v524 = vcvt.s32.f32 %v396
    %v525 = vcvt.s32.f32 %v397
    %v526 = vcvt.s32.f32 %v398
    %v527 = vcvt.s32.f32 %v399
    %v528 = vcvt.s32.f32 %v400
    %v529 = vcvt.s32.f32 %v401
    %v530 = vcvt.s32.f32 %v402
    %v531 = vcvt.s32.f32 %v403
    %v532 = vcvt.s32.f32 %v404
    %v533 = vcvt.s32.f32 %v405
    %v534 = vcvt.s32.f32 %v406
    %v535 = vcvt.s32.f32 %v407
    %v536 = vcvt.s32.f32 %v408
    %v537 = vcvt.s32.f32 %v409
    %v538 = vcvt.s32.f32 %v410
    %v539 = vcvt.s32.f32 %v411
    %v540 = vcvt.s32.f32 %v412
    %v541 = vcvt.s32.f32 %v413
    %v542 = vcvt.s32.f32 %v414
    %v543 = vld [vmem:[#allocation2] sm:$0xff]
    %v544 = vld [vmem:[#allocation2 + $0x8] sm:$0xff]
    %v545 = vld [vmem:[#allocation2 + $0x10] sm:$0xff]
    %v546 = vld [vmem:[#allocation2 + $0x18] sm:$0xff]
    %v547 = vld [vmem:[#allocation2 + $0x20] sm:$0xff]
    %v548 = vld [vmem:[#allocation2 + $0x28] sm:$0xff]
    %v549 = vld [vmem:[#allocation2 + $0x30] sm:$0xff]
    %v550 = vld [vmem:[#allocation2 + $0x38] sm:$0xff]
    %v551 = vld [vmem:[#allocation2 + $0x40] sm:$0xff]
    %v552 = vld [vmem:[#allocation2 + $0x48] sm:$0xff]
    %v553 = vld [vmem:[#allocation2 + $0x50] sm:$0xff]
    %v554 = vld [vmem:[#allocation2 + $0x58] sm:$0xff]
    %v555 = vld [vmem:[#allocation2 + $0x60] sm:$0xff]
    %v556 = vld [vmem:[#allocation2 + $0x68] sm:$0xff]
    %v557 = vld [vmem:[#allocation2 + $0x70] sm:$0xff]
    %v558 = vld [vmem:[#allocation2 + $0x78] sm:$0xff]
    %v559 = vld [vmem:[#allocation2 + $0x80] sm:$0xff]
    %v560 = vld [vmem:[#allocation2 + $0x88] sm:$0xff]
    %v561 = vld [vmem:[#allocation2 + $0x90] sm:$0xff]
    %v562 = vld [vmem:[#allocation2 + $0x98] sm:$0xff]
    %v563 = vld [vmem:[#allocation2 + $0xa0] sm:$0xff]
    %v564 = vld [vmem:[#allocation2 + $0xa8] sm:$0xff]
    %v565 = vld [vmem:[#allocation2 + $0xb0] sm:$0xff]
    %v566 = vld [vmem:[#allocation2 + $0xb8] sm:$0xff]
    %v567 = vld [vmem:[#allocation2 + $0xc0] sm:$0xff]
    %v568 = vld [vmem:[#allocation2 + $0xc8] sm:$0xff]
    %v569 = vld [vmem:[#allocation2 + $0xd0] sm:$0xff]
    %v570 = vld [vmem:[#allocation2 + $0xd8] sm:$0xff]
    %v571 = vld [vmem:[#allocation2 + $0xe0] sm:$0xff]
    %v572 = vld [vmem:[#allocation2 + $0xe8] sm:$0xff]
    %v573 = vld [vmem:[#allocation2 + $0xf0] sm:$0xff]
    %v574 = vld [vmem:[#allocation2 + $0xf8] sm:$0xff]
    %v575 = vld [vmem:[#allocation2 + $0x100] sm:$0xff]
    %v576 = vld [vmem:[#allocation2 + $0x108] sm:$0xff]
    %v577 = vld [vmem:[#allocation2 + $0x110] sm:$0xff]
    %v578 = vld [vmem:[#allocation2 + $0x118] sm:$0xff]
    %v579 = vld [vmem:[#allocation2 + $0x120] sm:$0xff]
    %v580 = vld [vmem:[#allocation2 + $0x128] sm:$0xff]
    %v581 = vld [vmem:[#allocation2 + $0x130] sm:$0xff]
    %v582 = vld [vmem:[#allocation2 + $0x138] sm:$0xff]
    %v583 = vld [vmem:[#allocation2 + $0x140] sm:$0xff]
    %v584 = vld [vmem:[#allocation2 + $0x148] sm:$0xff]
    %v585 = vld [vmem:[#allocation2 + $0x150] sm:$0xff]
    %v586 = vld [vmem:[#allocation2 + $0x158] sm:$0xff]
    %v587 = vld [vmem:[#allocation2 + $0x160] sm:$0xff]
    %v588 = vld [vmem:[#allocation2 + $0x168] sm:$0xff]
    %v589 = vld [vmem:[#allocation2 + $0x170] sm:$0xff]
    %v590 = vld [vmem:[#allocation2 + $0x178] sm:$0xff]
    %v591 = vld [vmem:[#allocation2 + $0x180] sm:$0xff]
    %v592 = vld [vmem:[#allocation2 + $0x188] sm:$0xff]
    %v593 = vld [vmem:[#allocation2 + $0x190] sm:$0xff]
    %v594 = vld [vmem:[#allocation2 + $0x198] sm:$0xff]
    %v595 = vld [vmem:[#allocation2 + $0x1a0] sm:$0xff]
    %v596 = vld [vmem:[#allocation2 + $0x1a8] sm:$0xff]
    %v597 = vld [vmem:[#allocation2 + $0x1b0] sm:$0xff]
    %v598 = vld [vmem:[#allocation2 + $0x1b8] sm:$0xff]
    %v599 = vld [vmem:[#allocation2 + $0x1c0] sm:$0xff]
    %v600 = vld [vmem:[#allocation2 + $0x1c8] sm:$0xff]
    %v601 = vld [vmem:[#allocation2 + $0x1d0] sm:$0xff]
    %v602 = vld [vmem:[#allocation2 + $0x1d8] sm:$0xff]
    %v603 = vld [vmem:[#allocation2 + $0x1e0] sm:$0xff]
    %v604 = vld [vmem:[#allocation2 + $0x1e8] sm:$0xff]
    %v605 = vld [vmem:[#allocation2 + $0x1f0] sm:$0xff]
    %v606 = vld [vmem:[#allocation2 + $0x1f8] sm:$0xff]
    %607 = vmatprep.subr.mxu0 0.0
    %608 = vmatpush1.msra.mxu0 %v543
    %609 = vmatprep.subr.mxu0 0.0
    %610 = vmatpush1.msra.mxu0 %v544
    %611 = vmatprep.subr.mxu0 0.0
    %612 = vmatpush1.msra.mxu0 %v545
    %613 = vmatprep.subr.mxu0 0.0
    %614 = vmatpush1.msra.mxu0 %v546
    %615 = vmatprep.subr.mxu0 0.0
    %616 = vmatpush1.msra.mxu0 %v547
    %617 = vmatprep.subr.mxu0 0.0
    %618 = vmatpush1.msra.mxu0 %v548
    %619 = vmatprep.subr.mxu0 0.0
    %620 = vmatpush1.msra.mxu0 %v549
    %621 = vmatprep.subr.mxu0 0.0
    %622 = vmatpush1.msra.mxu0 %v550
    %623 = vmatprep.subr.mxu0 0.0
    %624 = vmatpush1.msra.mxu0 %v551
    %625 = vmatprep.subr.mxu0 0.0
    %626 = vmatpush1.msra.mxu0 %v552
    %627 = vmatprep.subr.mxu0 0.0
    %628 = vmatpush1.msra.mxu0 %v553
    %629 = vmatprep.subr.mxu0 0.0
    %630 = vmatpush1.msra.mxu0 %v554
    %631 = vmatprep.subr.mxu0 0.0
    %632 = vmatpush1.msra.mxu0 %v555
    %633 = vmatprep.subr.mxu0 0.0
    %634 = vmatpush1.msra.mxu0 %v556
    %635 = vmatprep.subr.mxu0 0.0
    %636 = vmatpush1.msra.mxu0 %v557
    %637 = vmatprep.subr.mxu0 0.0
    %638 = vmatpush1.msra.mxu0 %v558
    %639 = vmatprep.subr.mxu0 0.0
    %640 = vmatpush1.msra.mxu0 %v559
    %641 = vmatprep.subr.mxu0 0.0
    %642 = vmatpush1.msra.mxu0 %v560
    %643 = vmatprep.subr.mxu0 0.0
    %644 = vmatpush1.msra.mxu0 %v561
    %645 = vmatprep.subr.mxu0 0.0
    %646 = vmatpush1.msra.mxu0 %v562
    %647 = vmatprep.subr.mxu0 0.0
    %648 = vmatpush1.msra.mxu0 %v563
    %649 = vmatprep.subr.mxu0 0.0
    %650 = vmatpush1.msra.mxu0 %v564
    %651 = vmatprep.subr.mxu0 0.0
    %652 = vmatpush1.msra.mxu0 %v565
    %653 = vmatprep.subr.mxu0 0.0
    %654 = vmatpush1.msra.mxu0 %v566
    %655 = vmatprep.subr.mxu0 0.0
    %656 = vmatpush1.msra.mxu0 %v567
    %657 = vmatprep.subr.mxu0 0.0
    %658 = vmatpush1.msra.mxu0 %v568
    %659 = vmatprep.subr.mxu0 0.0
    %660 = vmatpush1.msra.mxu0 %v569
    %661 = vmatprep.subr.mxu0 0.0
    %662 = vmatpush1.msra.mxu0 %v570
    %663 = vmatprep.subr.mxu0 0.0
    %664 = vmatpush1.msra.mxu0 %v571
    %665 = vmatprep.subr.mxu0 0.0
    %666 = vmatpush1.msra.mxu0 %v572
    %667 = vmatprep.subr.mxu0 0.0
    %668 = vmatpush1.msra.mxu0 %v573
    %669 = vmatprep.subr.mxu0 0.0
    %670 = vmatpush1.msra.mxu0 %v574
    %671 = vmatprep.mubr.f32.mxu0 %v416
    %672 = vmatmul.mubr.f32.gmra.mrb[0].mxu0 %v415
    %v673 = vpop.f32.mrb[0].mxu0
    %v674 = vadd.f32 0.0, %v673
    %v675 = vpop.f32.mrb[0].mxu0
    %676 = vmatprep.mubr.f32.mxu0 %v420
    %677 = vmatmul.mubr.f32.gmra.mrb[0].mxu0 %v419
    %v678 = vpop.f32.mrb[0].mxu0
    %v679 = vadd.f32 0.0, %v678
    %v680 = vpop.f32.mrb[0].mxu0
    %681 = vmatprep.mubr.f32.mxu0 %v424
    %682 = vmatmul.mubr.f32.gmra.mrb[0].mxu0 %v423
    %v683 = vpop.f32.mrb[0].mxu0
    %v684 = vadd.f32 0.0, %v683
    %v685 = vpop.f32.mrb[0].mxu0
    %686 = vmatprep.mubr.f32.mxu0 %v428
    %687 = vmatmul.mubr.f32.gmra.mrb[0].mxu0 %v427
    %v688 = vpop.f32.mrb[0].mxu0
    %v689 = vadd.f32 0.0, %v688
    %v690 = vpop.f32.mrb[0].mxu0
    %691 = vmatprep.mubr.f32.mxu0 %v432
    %692 = vmatmul.mubr.f32.gmra.mrb[0].mxu0 %v431
    %v693 = vpop.f32.mrb[0].mxu0
    %v694 = vadd.f32 0.0, %v693
    %v695 = vpop.f32.mrb[0].mxu0
    %696 = vmatprep.mubr.f32.mxu0 %v436
    %697 = vmatmul.mubr.f32.gmra.mrb[0].mxu0 %v435
    %v698 = vpop.f32.mrb[0].mxu0
    %v699 = vadd.f32 0.0, %v698
    %v700 = vpop.f32.mrb[0].mxu0
    %701 = vmatprep.mubr.f32.mxu0 %v440
    %702 = vmatmul.mubr.f32.gmra.mrb[0].mxu0 %v439
    %v703 = vpop.f32.mrb[0].mxu0
    %v704 = vadd.f32 0.0, %v703
    %v705 = vpop.f32.mrb[0].mxu0
    %706 = vmatprep.mubr.f32.mxu0 %v444
    %707 = vmatmul.mubr.f32.gmra.mrb[0].mxu0 %v443
    %v708 = vpop.f32.mrb[0].mxu0
    %v709 = vadd.f32 0.0, %v708
    %v710 = vpop.f32.mrb[0].mxu0
    %711 = vmatprep.mubr.f32.mxu0 %v448
    %712 = vmatmul.mubr.f32.gmra.mrb[0].mxu0 %v447
    %v713 = vpop.f32.mrb[0].mxu0
    %v714 = vadd.f32 0.0, %v713
    %v715 = vpop.f32.mrb[0].mxu0
    %716 = vmatprep.mubr.f32.mxu0 %v452
    %717 = vmatmul.mubr.f32.gmra.mrb[0].mxu0 %v451
    %v718 = vpop.f32.mrb[0].mxu0
    %v719 = vadd.f32 0.0, %v718
    %v720 = vpop.f32.mrb[0].mxu0
    %721 = vmatprep.mubr.f32.mxu0 %v456
    %722 = vmatmul.mubr.f32.gmra.mrb[0].mxu0 %v455
    %v723 = vpop.f32.mrb[0].mxu0
    %v724 = vadd.f32 0.0, %v723
    %v725 = vpop.f32.mrb[0].mxu0
    %726 = vmatprep.mubr.f32.mxu0 %v460
    %727 = vmatmul.mubr.f32.gmra.mrb[0].mxu0 %v459
    %v728 = vpop.f32.mrb[0].mxu0
    %v729 = vadd.f32 0.0, %v728
    %v730 = vpop.f32.mrb[0].mxu0
    %731 = vmatprep.mubr.f32.mxu0 %v464
    %732 = vmatmul.mubr.f32.gmra.mrb[0].mxu0 %v463
    %v733 = vpop.f32.mrb[0].mxu0
    %v734 = vadd.f32 0.0, %v733
    %v735 = vpop.f32.mrb[0].mxu0
    %736 = vmatprep.mubr.f32.mxu0 %v468
    %737 = vmatmul.mubr.f32.gmra.mrb[0].mxu0 %v467
    %v738 = vpop.f32.mrb[0].mxu0
    %v739 = vadd.f32 0.0, %v738
    %v740 = vpop.f32.mrb[0].mxu0
    %741 = vmatprep.mubr.f32.mxu0 %v472
    %742 = vmatmul.mubr.f32.gmra.mrb[0].mxu0 %v471
    %v743 = vpop.f32.mrb[0].mxu0
    %v744 = vadd.f32 0.0, %v743
    %v745 = vpop.f32.mrb[0].mxu0
    %746 = vmatprep.mubr.f32.mxu0 %v476
    %747 = vmatmul.mubr.f32.gmra.mrb[0].mxu0 %v475
    %v748 = vpop.f32.mrb[0].mxu0
    %v749 = vadd.f32 0.0, %v748
    %v750 = vpop.f32.mrb[0].mxu0
    %751 = vmatprep.mubr.f32.mxu0 %v480
    %752 = vmatmul.mubr.f32.gmra.mrb[0].mxu0 %v479
    %v753 = vpop.f32.mrb[0].mxu0
    %v754 = vadd.f32 0.0, %v753
    %v755 = vpop.f32.mrb[0].mxu0
    %756 = vmatprep.mubr.f32.mxu0 %v484
    %757 = vmatmul.mubr.f32.gmra.mrb[0].mxu0 %v483
    %v758 = vpop.f32.mrb[0].mxu0
    %v759 = vadd.f32 0.0, %v758
    %v760 = vpop.f32.mrb[0].mxu0
    %761 = vmatprep.mubr.f32.mxu0 %v488
    %762 = vmatmul.mubr.f32.gmra.mrb[0].mxu0 %v487
    %v763 = vpop.f32.mrb[0].mxu0
    %v764 = vadd.f32 0.0, %v763
    %v765 = vpop.f32.mrb[0].mxu0
    %766 = vmatprep.mubr.f32.mxu0 %v492
    %767 = vmatmul.mubr.f32.gmra.mrb[0].mxu0 %v491
    %v768 = vpop.f32.mrb[0].mxu0
    %v769 = vadd.f32 0.0, %v768
    %v770 = vpop.f32.mrb[0].mxu0
    %771 = vmatprep.mubr.f32.mxu0 %v496
    %772 = vmatmul.mubr.f32.gmra.mrb[0].mxu0 %v495
    %v773 = vpop.f32.mrb[0].mxu0
    %v774 = vadd.f32 0.0, %v773
    %v775 = vpop.f32.mrb[0].mxu0
    %776 = vmatprep.mubr.f32.mxu0 %v500
    %777 = vmatmul.mubr.f32.gmra.mrb[0].mxu0 %v499
    %v778 = vpop.f32.mrb[0].mxu0
    %v779 = vadd.f32 0.0, %v778
    %v780 = vpop.f32.mrb[0].mxu0
    %781 = vmatprep.mubr.f32.mxu0 %v504
    %782 = vmatmul.mubr.f32.gmra.mrb[0].mxu0 %v503
    %v783 = vpop.f32.mrb[0].mxu0
    %v784 = vadd.f32 0.0, %v783
    %v785 = vpop.f32.mrb[0].mxu0
    %786 = vmatprep.mubr.f32.mxu0 %v508
    %787 = vmatmul.mubr.f32.gmra.mrb[0].mxu0 %v507
    %v788 = vpop.f32.mrb[0].mxu0
    %v789 = vadd.f32 0.0, %v788
    %v790 = vpop.f32.mrb[0].mxu0
    %791 = vmatprep.mubr.f32.mxu0 %v512
    %792 = vmatmul.mubr.f32.gmra.mrb[0].mxu0 %v511
    %v793 = vpop.f32.mrb[0].mxu0
    %v794 = vadd.f32 0.0, %v793
    %v795 = vpop.f32.mrb[0].mxu0
    %796 = vmatprep.mubr.f32.mxu0 %v516
    %797 = vmatmul.mubr.f32.gmra.mrb[0].mxu0 %v515
    %v798 = vpop.f32.mrb[0].mxu0
    %v799 = vadd.f32 0.0, %v798
    %v800 = vpop.f32.mrb[0].mxu0
    %801 = vmatprep.mubr.f32.mxu0 %v520
    %802 = vmatmul.mubr.f32.gmra.mrb[0].mxu0 %v519
    %v803 = vpop.f32.mrb[0].mxu0
    %v804 = vadd.f32 0.0, %v803
    %v805 = vpop.f32.mrb[0].mxu0
    %806 = vmatprep.mubr.f32.mxu0 %v524
    %807 = vmatmul.mubr.f32.gmra.mrb[0].mxu0 %v523
    %v808 = vpop.f32.mrb[0].mxu0
    %v809 = vadd.f32 0.0, %v808
    %v810 = vpop.f32.mrb[0].mxu0
    %811 = vmatprep.mubr.f32.mxu0 %v528
    %812 = vmatmul.mubr.f32.gmra.mrb[0].mxu0 %v527
    %v813 = vpop.f32.mrb[0].mxu0
    %v814 = vadd.f32 0.0, %v813
    %v815 = vpop.f32.mrb[0].mxu0
    %816 = vmatprep.mubr.f32.mxu0 %v532
    %817 = vmatmul.mubr.f32.gmra.mrb[0].mxu0 %v531
    %v818 = vpop.f32.mrb[0].mxu0
    %v819 = vadd.f32 0.0, %v818
    %v820 = vpop.f32.mrb[0].mxu0
    %821 = vmatprep.mubr.f32.mxu0 %v536
    %822 = vmatmul.mubr.f32.gmra.mrb[0].mxu0 %v535
    %v823 = vpop.f32.mrb[0].mxu0
    %v824 = vadd.f32 0.0, %v823
    %v825 = vpop.f32.mrb[0].mxu0
    %826 = vmatprep.mubr.f32.mxu0 %v540
    %827 = vmatmul.mubr.f32.gmra.mrb[0].mxu0 %v539
    %v828 = vpop.f32.mrb[0].mxu0
    %v829 = vadd.f32 0.0, %v828
    %v830 = vpop.f32.mrb[0].mxu0
    %831 = vdwg.mxu0
    %832 = vmatprep.subr.mxu0 0.0
    %833 = vmatpush1.msra.mxu0 %v575
    %834 = vmatprep.subr.mxu0 0.0
    %835 = vmatpush1.msra.mxu0 %v576
    %836 = vmatprep.subr.mxu0 0.0
    %837 = vmatpush1.msra.mxu0 %v577
    %838 = vmatprep.subr.mxu0 0.0
    %839 = vmatpush1.msra.mxu0 %v578
    %840 = vmatprep.subr.mxu0 0.0
    %841 = vmatpush1.msra.mxu0 %v579
    %842 = vmatprep.subr.mxu0 0.0
    %843 = vmatpush1.msra.mxu0 %v580
    %844 = vmatprep.subr.mxu0 0.0
    %845 = vmatpush1.msra.mxu0 %v581
    %846 = vmatprep.subr.mxu0 0.0
    %847 = vmatpush1.msra.mxu0 %v582
    %848 = vmatprep.subr.mxu0 0.0
    %849 = vmatpush1.msra.mxu0 %v583
    %850 = vmatprep.subr.mxu0 0.0
    %851 = vmatpush1.msra.mxu0 %v584
    %852 = vmatprep.subr.mxu0 0.0
    %853 = vmatpush1.msra.mxu0 %v585
    %854 = vmatprep.subr.mxu0 0.0
    %855 = vmatpush1.msra.mxu0 %v586
    %856 = vmatprep.subr.mxu0 0.0
    %857 = vmatpush1.msra.mxu0 %v587
    %858 = vmatprep.subr.mxu0 0.0
    %859 = vmatpush1.msra.mxu0 %v588
    %860 = vmatprep.subr.mxu0 0.0
    %861 = vmatpush1.msra.mxu0 %v589
    %862 = vmatprep.subr.mxu0 0.0
    %863 = vmatpush1.msra.mxu0 %v590
    %864 = vmatprep.subr.mxu0 0.0
    %865 = vmatpush1.msra.mxu0 %v591
    %866 = vmatprep.subr.mxu0 0.0
    %867 = vmatpush1.msra.mxu0 %v592
    %868 = vmatprep.subr.mxu0 0.0
    %869 = vmatpush1.msra.mxu0 %v593
    %870 = vmatprep.subr.mxu0 0.0
    %871 = vmatpush1.msra.mxu0 %v594
    %872 = vmatprep.subr.mxu0 0.0
    %873 = vmatpush1.msra.mxu0 %v595
    %874 = vmatprep.subr.mxu0 0.0
    %875 = vmatpush1.msra.mxu0 %v596
    %876 = vmatprep.subr.mxu0 0.0
    %877 = vmatpush1.msra.mxu0 %v597
    %878 = vmatprep.subr.mxu0 0.0
    %879 = vmatpush1.msra.mxu0 %v598
    %880 = vmatprep.subr.mxu0 0.0
    %881 = vmatpush1.msra.mxu0 %v599
    %882 = vmatprep.subr.mxu0 0.0
    %883 = vmatpush1.msra.mxu0 %v600
    %884 = vmatprep.subr.mxu0 0.0
    %885 = vmatpush1.msra.mxu0 %v601
    %886 = vmatprep.subr.mxu0 0.0
    %887 = vmatpush1.msra.mxu0 %v602
    %888 = vmatprep.subr.mxu0 0.0
    %889 = vmatpush1.msra.mxu0 %v603
    %890 = vmatprep.subr.mxu0 0.0
    %891 = vmatpush1.msra.mxu0 %v604
    %892 = vmatprep.subr.mxu0 0.0
    %893 = vmatpush1.msra.mxu0 %v605
    %894 = vmatprep.subr.mxu0 0.0
    %895 = vmatpush1.msra.mxu0 %v606
    %896 = vmatprep.mubr.f32.mxu0 %v418
    %897 = vmatmul.mubr.f32.gmra.mrb[0].mxu0 %v417
    %v898 = vpop.f32.mrb[0].mxu0
    %v899 = vadd.f32 %v674, %v898
    %v900 = vpop.f32.mrb[0].mxu0
    %901 = vmatprep.mubr.f32.mxu0 %v422
    %902 = vmatmul.mubr.f32.gmra.mrb[0].mxu0 %v421
    %v903 = vpop.f32.mrb[0].mxu0
    %v904 = vadd.f32 %v679, %v903
    %v905 = vpop.f32.mrb[0].mxu0
    %906 = vmatprep.mubr.f32.mxu0 %v426
    %907 = vmatmul.mubr.f32.gmra.mrb[0].mxu0 %v425
    %v908 = vpop.f32.mrb[0].mxu0
    %v909 = vadd.f32 %v684, %v908
    %v910 = vpop.f32.mrb[0].mxu0
    %911 = vmatprep.mubr.f32.mxu0 %v430
    %912 = vmatmul.mubr.f32.gmra.mrb[0].mxu0 %v429
    %v913 = vpop.f32.mrb[0].mxu0
    %v914 = vadd.f32 %v689, %v913
    %v915 = vpop.f32.mrb[0].mxu0
    %916 = vmatprep.mubr.f32.mxu0 %v434
    %917 = vmatmul.mubr.f32.gmra.mrb[0].mxu0 %v433
    %v918 = vpop.f32.mrb[0].mxu0
    %v919 = vadd.f32 %v694, %v918
    %v920 = vpop.f32.mrb[0].mxu0
    %921 = vmatprep.mubr.f32.mxu0 %v438
    %922 = vmatmul.mubr.f32.gmra.mrb[0].mxu0 %v437
    %v923 = vpop.f32.mrb[0].mxu0
    %v924 = vadd.f32 %v699, %v923
    %v925 = vpop.f32.mrb[0].mxu0
    %926 = vmatprep.mubr.f32.mxu0 %v442
    %927 = vmatmul.mubr.f32.gmra.mrb[0].mxu0 %v441
    %v928 = vpop.f32.mrb[0].mxu0
    %v929 = vadd.f32 %v704, %v928
    %v930 = vpop.f32.mrb[0].mxu0
    %931 = vmatprep.mubr.f32.mxu0 %v446
    %932 = vmatmul.mubr.f32.gmra.mrb[0].mxu0 %v445
    %v933 = vpop.f32.mrb[0].mxu0
    %v934 = vadd.f32 %v709, %v933
    %v935 = vpop.f32.mrb[0].mxu0
    %936 = vmatprep.mubr.f32.mxu0 %v450
    %937 = vmatmul.mubr.f32.gmra.mrb[0].mxu0 %v449
    %v938 = vpop.f32.mrb[0].mxu0
    %v939 = vadd.f32 %v714, %v938
    %v940 = vpop.f32.mrb[0].mxu0
    %941 = vmatprep.mubr.f32.mxu0 %v454
    %942 = vmatmul.mubr.f32.gmra.mrb[0].mxu0 %v453
    %v943 = vpop.f32.mrb[0].mxu0
    %v944 = vadd.f32 %v719, %v943
    %v945 = vpop.f32.mrb[0].mxu0
    %946 = vmatprep.mubr.f32.mxu0 %v458
    %947 = vmatmul.mubr.f32.gmra.mrb[0].mxu0 %v457
    %v948 = vpop.f32.mrb[0].mxu0
    %v949 = vadd.f32 %v724, %v948
    %v950 = vpop.f32.mrb[0].mxu0
    %951 = vmatprep.mubr.f32.mxu0 %v462
    %952 = vmatmul.mubr.f32.gmra.mrb[0].mxu0 %v461
    %v953 = vpop.f32.mrb[0].mxu0
    %v954 = vadd.f32 %v729, %v953
    %v955 = vpop.f32.mrb[0].mxu0
    %956 = vmatprep.mubr.f32.mxu0 %v466
    %957 = vmatmul.mubr.f32.gmra.mrb[0].mxu0 %v465
    %v958 = vpop.f32.mrb[0].mxu0
    %v959 = vadd.f32 %v734, %v958
    %v960 = vpop.f32.mrb[0].mxu0
    %961 = vmatprep.mubr.f32.mxu0 %v470
    %962 = vmatmul.mubr.f32.gmra.mrb[0].mxu0 %v469
    %v963 = vpop.f32.mrb[0].mxu0
    %v964 = vadd.f32 %v739, %v963
    %v965 = vpop.f32.mrb[0].mxu0
    %966 = vmatprep.mubr.f32.mxu0 %v474
    %967 = vmatmul.mubr.f32.gmra.mrb[0].mxu0 %v473
    %v968 = vpop.f32.mrb[0].mxu0
    %v969 = vadd.f32 %v744, %v968
    %v970 = vpop.f32.mrb[0].mxu0
    %971 = vmatprep.mubr.f32.mxu0 %v478
    %972 = vmatmul.mubr.f32.gmra.mrb[0].mxu0 %v477
    %v973 = vpop.f32.mrb[0].mxu0
    %v974 = vadd.f32 %v749, %v973
    %v975 = vpop.f32.mrb[0].mxu0
    %976 = vmatprep.mubr.f32.mxu0 %v482
    %977 = vmatmul.mubr.f32.gmra.mrb[0].mxu0 %v481
    %v978 = vpop.f32.mrb[0].mxu0
    %v979 = vadd.f32 %v754, %v978
    %v980 = vpop.f32.mrb[0].mxu0
    %981 = vmatprep.mubr.f32.mxu0 %v486
    %982 = vmatmul.mubr.f32.gmra.mrb[0].mxu0 %v485
    %v983 = vpop.f32.mrb[0].mxu0
    %v984 = vadd.f32 %v759, %v983
    %v985 = vpop.f32.mrb[0].mxu0
    %986 = vmatprep.mubr.f32.mxu0 %v490
    %987 = vmatmul.mubr.f32.gmra.mrb[0].mxu0 %v489
    %v988 = vpop.f32.mrb[0].mxu0
    %v989 = vadd.f32 %v764, %v988
    %v990 = vpop.f32.mrb[0].mxu0
    %991 = vmatprep.mubr.f32.mxu0 %v494
    %992 = vmatmul.mubr.f32.gmra.mrb[0].mxu0 %v493
    %v993 = vpop.f32.mrb[0].mxu0
    %v994 = vadd.f32 %v769, %v993
    %v995 = vpop.f32.mrb[0].mxu0
    %996 = vmatprep.mubr.f32.mxu0 %v498
    %997 = vmatmul.mubr.f32.gmra.mrb[0].mxu0 %v497
    %v998 = vpop.f32.mrb[0].mxu0
    %v999 = vadd.f32 %v774, %v998
    %v1000 = vpop.f32.mrb[0].mxu0
    %1001 = vmatprep.mubr.f32.mxu0 %v502
    %1002 = vmatmul.mubr.f32.gmra.mrb[0].mxu0 %v501
    %v1003 = vpop.f32.mrb[0].mxu0
    %v1004 = vadd.f32 %v779, %v1003
    %v1005 = vpop.f32.mrb[0].mxu0
    %1006 = vmatprep.mubr.f32.mxu0 %v506
    %1007 = vmatmul.mubr.f32.gmra.mrb[0].mxu0 %v505
    %v1008 = vpop.f32.mrb[0].mxu0
    %v1009 = vadd.f32 %v784, %v1008
    %v1010 = vpop.f32.mrb[0].mxu0
    %1011 = vmatprep.mubr.f32.mxu0 %v510
    %1012 = vmatmul.mubr.f32.gmra.mrb[0].mxu0 %v509
    %v1013 = vpop.f32.mrb[0].mxu0
    %v1014 = vadd.f32 %v789, %v1013
    %v1015 = vpop.f32.mrb[0].mxu0
    %1016 = vmatprep.mubr.f32.mxu0 %v514
    %1017 = vmatmul.mubr.f32.gmra.mrb[0].mxu0 %v513
    %v1018 = vpop.f32.mrb[0].mxu0
    %v1019 = vadd.f32 %v794, %v1018
    %v1020 = vpop.f32.mrb[0].mxu0
    %1021 = vmatprep.mubr.f32.mxu0 %v518
    %1022 = vmatmul.mubr.f32.gmra.mrb[0].mxu0 %v517
    %v1023 = vpop.f32.mrb[0].mxu0
    %v1024 = vadd.f32 %v799, %v1023
    %v1025 = vpop.f32.mrb[0].mxu0
    %1026 = vmatprep.mubr.f32.mxu0 %v522
    %1027 = vmatmul.mubr.f32.gmra.mrb[0].mxu0 %v521
    %v1028 = vpop.f32.mrb[0].mxu0
    %v1029 = vadd.f32 %v804, %v1028
    %v1030 = vpop.f32.mrb[0].mxu0
    %1031 = vmatprep.mubr.f32.mxu0 %v526
    %1032 = vmatmul.mubr.f32.gmra.mrb[0].mxu0 %v525
    %v1033 = vpop.f32.mrb[0].mxu0
    %v1034 = vadd.f32 %v809, %v1033
    %v1035 = vpop.f32.mrb[0].mxu0
    %1036 = vmatprep.mubr.f32.mxu0 %v530
    %1037 = vmatmul.mubr.f32.gmra.mrb[0].mxu0 %v529
    %v1038 = vpop.f32.mrb[0].mxu0
    %v1039 = vadd.f32 %v814, %v1038
    %v1040 = vpop.f32.mrb[0].mxu0
    %1041 = vmatprep.mubr.f32.mxu0 %v534
    %1042 = vmatmul.mubr.f32.gmra.mrb[0].mxu0 %v533
    %v1043 = vpop.f32.mrb[0].mxu0
    %v1044 = vadd.f32 %v819, %v1043
    %v1045 = vpop.f32.mrb[0].mxu0
    %1046 = vmatprep.mubr.f32.mxu0 %v538
    %1047 = vmatmul.mubr.f32.gmra.mrb[0].mxu0 %v537
    %v1048 = vpop.f32.mrb[0].mxu0
    %v1049 = vadd.f32 %v824, %v1048
    %v1050 = vpop.f32.mrb[0].mxu0
    %1051 = vmatprep.mubr.f32.mxu0 %v542
    %1052 = vmatmul.mubr.f32.gmra.mrb[0].mxu0 %v541
    %v1053 = vpop.f32.mrb[0].mxu0
    %v1054 = vadd.f32 %v829, %v1053
    %v1055 = vpop.f32.mrb[0].mxu0
    %1056 = vdwg.mxu0
    %v1057 = vmul.f32 %v899, 11.313708
    %v1058 = vmul.f32 %v904, 11.313708
    %v1059 = vmul.f32 %v909, 11.313708
    %v1060 = vmul.f32 %v914, 11.313708
    %v1061 = vmul.f32 %v919, 11.313708
    %v1062 = vmul.f32 %v924, 11.313708
    %v1063 = vmul.f32 %v929, 11.313708
    %v1064 = vmul.f32 %v934, 11.313708
    %v1065 = vmul.f32 %v939, 11.313708
    %v1066 = vmul.f32 %v944, 11.313708
    %v1067 = vmul.f32 %v949, 11.313708
    %v1068 = vmul.f32 %v954, 11.313708
    %v1069 = vmul.f32 %v959, 11.313708
    %v1070 = vmul.f32 %v964, 11.313708
    %v1071 = vmul.f32 %v969, 11.313708
    %v1072 = vmul.f32 %v974, 11.313708
    %v1073 = vmul.f32 %v979, 11.313708
    %v1074 = vmul.f32 %v984, 11.313708
    %v1075 = vmul.f32 %v989, 11.313708
    %v1076 = vmul.f32 %v994, 11.313708
    %v1077 = vmul.f32 %v999, 11.313708
    %v1078 = vmul.f32 %v1004, 11.313708
    %v1079 = vmul.f32 %v1009, 11.313708
    %v1080 = vmul.f32 %v1014, 11.313708
    %v1081 = vmul.f32 %v1019, 11.313708
    %v1082 = vmul.f32 %v1024, 11.313708
    %v1083 = vmul.f32 %v1029, 11.313708
    %v1084 = vmul.f32 %v1034, 11.313708
    %v1085 = vmul.f32 %v1039, 11.313708
    %v1086 = vmul.f32 %v1044, 11.313708
    %v1087 = vmul.f32 %v1049, 11.313708
    %v1088 = vmul.f32 %v1054, 11.313708
    %1089 = vst [vmem:[#allocation5] sm:$0xff] %v1057
    %1090 = vst [vmem:[#allocation5 + $0x8] sm:$0xff] %v1058
    %1091 = vst [vmem:[#allocation5 + $0x10] sm:$0xff] %v1059
    %1092 = vst [vmem:[#allocation5 + $0x18] sm:$0xff] %v1060
    %1093 = vst [vmem:[#allocation5 + $0x20] sm:$0xff] %v1061
    %1094 = vst [vmem:[#allocation5 + $0x28] sm:$0xff] %v1062
    %1095 = vst [vmem:[#allocation5 + $0x30] sm:$0xff] %v1063
    %1096 = vst [vmem:[#allocation5 + $0x38] sm:$0xff] %v1064
    %1097 = vst [vmem:[#allocation5 + $0x40] sm:$0xff] %v1065
    %1098 = vst [vmem:[#allocation5 + $0x48] sm:$0xff] %v1066
    %1099 = vst [vmem:[#allocation5 + $0x50] sm:$0xff] %v1067
    %1100 = vst [vmem:[#allocation5 + $0x58] sm:$0xff] %v1068
    %1101 = vst [vmem:[#allocation5 + $0x60] sm:$0xff] %v1069
    %1102 = vst [vmem:[#allocation5 + $0x68] sm:$0xff] %v1070
    %1103 = vst [vmem:[#allocation5 + $0x70] sm:$0xff] %v1071
    %1104 = vst [vmem:[#allocation5 + $0x78] sm:$0xff] %v1072
    %1105 = vst [vmem:[#allocation5 + $0x80] sm:$0xff] %v1073
    %1106 = vst [vmem:[#allocation5 + $0x88] sm:$0xff] %v1074
    %1107 = vst [vmem:[#allocation5 + $0x90] sm:$0xff] %v1075
    %1108 = vst [vmem:[#allocation5 + $0x98] sm:$0xff] %v1076
    %1109 = vst [vmem:[#allocation5 + $0xa0] sm:$0xff] %v1077
    %1110 = vst [vmem:[#allocation5 + $0xa8] sm:$0xff] %v1078
    %1111 = vst [vmem:[#allocation5 + $0xb0] sm:$0xff] %v1079
    %1112 = vst [vmem:[#allocation5 + $0xb8] sm:$0xff] %v1080
    %1113 = vst [vmem:[#allocation5 + $0xc0] sm:$0xff] %v1081
    %1114 = vst [vmem:[#allocation5 + $0xc8] sm:$0xff] %v1082
    %1115 = vst [vmem:[#allocation5 + $0xd0] sm:$0xff] %v1083
    %1116 = vst [vmem:[#allocation5 + $0xd8] sm:$0xff] %v1084
    %1117 = vst [vmem:[#allocation5 + $0xe0] sm:$0xff] %v1085
    %1118 = vst [vmem:[#allocation5 + $0xe8] sm:$0xff] %v1086
    %1119 = vst [vmem:[#allocation5 + $0xf0] sm:$0xff] %v1087
    %1120 = vst [vmem:[#allocation5 + $0xf8] sm:$0xff] %v1088
    // Predicated region
    $region14: #{tpu_custom_call.1} parent=1 // pred_check
      _
    $region15: #{tpu_custom_call.1} parent=1 // pred_check_branch
      %1122 = sbr.rel (0) target = $region17
    $region16: #{tpu_custom_call.1} parent=1 // pred_region
      %s1124 = ssub.s32 4096, 4096
      %1125 = vsyncadd [#allocation4], %s1124
      %s1126 = sshll.u32 [#allocation5], 4
      %s1127 = int_to_ptr.vmem [resolvable:$true] %s1126
      %1132 = dma.vmem_to_hbm [thread:$0]  %s1127, 4096, %s2, [#allocation4], 128, 128, 8
    $region17: #{tpu_custom_call.1} parent=1 // pred_fallthru
      _
    // Predicated region
    $region18: #{tpu_custom_call.1} parent=1 // pred_check
      _
    $region19: #{tpu_custom_call.1} parent=1 // pred_check_branch
      %1134 = sbr.rel (0) target = $region21
    $region20: #{tpu_custom_call.1} parent=1 // pred_region
      %1135 = dma.done [#allocation4], 4096
    $region21: #{tpu_custom_call.1} parent=1 // pred_fallthru
      _
    %1136 = vsyncpa [#allocation3], 1
    %1137 = vsyncpa [#allocation4], 1

</llo_original>
